<compile_context>
chip_gen: v7x
topology: tpu7x:2x2x1
jax: 0.10.0
libtpu: 0.0.40
codegen_flags: <defaults>
</compile_context>

<pallas_src>
import functools

import jax
import jax.numpy as jnp
import numpy as np
from jax.experimental import pallas as pl
from jax.experimental.pallas import tpu as pltpu


# ----------------------------- kernels ------------------------------------ #

def _norm_kernel(x_ref, p_ref, y_ref, stats_ref, *, eps):
    # x_ref: (RB, T)  rows = (batch, channel) series, T on lanes.
    # p_ref: (RB, 3)  columns = [affine_weight, affine_bias, kurtosis_weight].
    # y_ref: (RB, T)  normalized output.
    # stats_ref: (RB, 3) float32, columns = [mean, stdev, kurtosis_adjustment].
    x = x_ref[...].astype(jnp.float32)

    w = p_ref[:, 0:1]
    b = p_ref[:, 1:2]
    kw = p_ref[:, 2:3]

    # Lane (XLU) reductions over T; everything below is (RB, 1).
    mean = jnp.mean(x, axis=-1, keepdims=True)
    xc = x - mean
    xc2 = xc * xc
    var = jnp.mean(xc2, axis=-1, keepdims=True)           # unbiased=False
    m4 = jnp.mean(xc2 * xc2, axis=-1, keepdims=True)      # central 4th moment

    stdev = jnp.sqrt(var + eps)
    inv_std = 1.0 / stdev                                  # exact, (RB,1) only
    inv_std2 = inv_std * inv_std
    kurtosis = m4 * (inv_std2 * inv_std2) - 3.0
    kurt_adj = (kw + eps) / (kurtosis + eps)

    # y = ((x - mean) / stdev) / kurt_adj * w + b  -> single FMA on (RB, T).
    scale = (w * inv_std) / kurt_adj                       # (RB, 1)
    y_ref[...] = (xc * scale + b).astype(y_ref.dtype)

    stats_ref[:, 0:1] = mean
    stats_ref[:, 1:2] = stdev
    stats_ref[:, 2:3] = kurt_adj


def _denorm_kernel(x_ref, p_ref, s_ref, y_ref, *, eps):
    # x_ref: (RB, T); p_ref: (RB, 2) [w, b]; s_ref: (RB, 3) [mean, stdev, kadj].
    x = x_ref[...].astype(jnp.float32)
    w = p_ref[:, 0:1]
    b = p_ref[:, 1:2]
    mean = s_ref[:, 0:1]
    stdev = s_ref[:, 1:2]
    kadj = s_ref[:, 2:3]

    # ((x - b) / (w + eps^2)) * kadj * stdev + mean  ==  x * scale + shift
    scale = (kadj * stdev) / (w + eps * eps)               # (RB, 1)
    shift = mean - b * scale                               # (RB, 1)
    y_ref[...] = (x * scale + shift).astype(y_ref.dtype)


# ----------------------------- helpers ------------------------------------ #

def _row_block(n_rows, t, target_bytes=1 << 20):
    """Rows per grid step: ~1 MiB f32 x-tile, a multiple of 8 sublanes, and
    capped at ~half the rows so the grid keeps >= 2 steps when possible."""
    rb = (target_bytes // max(4 * t, 1)) // 8 * 8
    rb = max(8, rb)
    half = max(8, (((n_rows + 1) // 2 + 7) // 8) * 8)
    return int(min(rb, half))


def _pad_rows(a, r_pad, value):
    r = a.shape[0]
    if r_pad == r:
        return a
    return jnp.pad(a, ((0, r_pad - r), (0, 0)), constant_values=value)


_VMEM_LIMIT = 32 * 1024 * 1024  # safe headroom on all of v5e / v6e / v7x


# ----------------------------- wrappers ------------------------------------ #

def revin_sk_norm(x, affine_weight, affine_bias, kurtosis_weight, eps=1e-5):
    """mode='norm'. Returns (y, mean, stdev, kurtosis_adjustment)."""
    B, T, C = x.shape
    R = B * C

    # Lane-dense re-layout: row r = b*C + c, T on lanes.
    x_rows = jnp.transpose(x, (0, 2, 1)).reshape(R, T)
    prm = jnp.stack([affine_weight, affine_bias, kurtosis_weight], axis=-1)
    prm_rows = jnp.tile(prm.astype(jnp.float32), (B, 1))    # (R, 3)

    rb = _row_block(R, T)
    n_steps = pl.cdiv(R, rb)
    r_pad = n_steps * rb
    x_rows = _pad_rows(x_rows, r_pad, 0.0)
    prm_rows = _pad_rows(prm_rows, r_pad, 1.0)

    kernel = functools.partial(_norm_kernel, eps=eps)
    y_rows, stats = pl.pallas_call(
        kernel,
        out_shape=(
            jax.ShapeDtypeStruct((r_pad, T), x.dtype),       # normalized rows
            jax.ShapeDtypeStruct((r_pad, 3), jnp.float32),   # [mean, std, kadj]
        ),
        grid_spec=pltpu.PrefetchScalarGridSpec(
            num_scalar_prefetch=0,
            grid=(n_steps,),
            in_specs=[pl.BlockSpec((rb, T), lambda i: (i, 0)),
                      pl.BlockSpec((rb, 3), lambda i: (i, 0))],
            out_specs=[pl.BlockSpec((rb, T), lambda i: (i, 0)),
                       pl.BlockSpec((rb, 3), lambda i: (i, 0))],
        ),
        compiler_params=pltpu.CompilerParams(
            dimension_semantics=("parallel",),
            vmem_limit_bytes=_VMEM_LIMIT),
    )(x_rows, prm_rows)

    y = jnp.transpose(y_rows[:R].reshape(B, C, T), (0, 2, 1))
    mean = stats[:R, 0].reshape(B, 1, C)
    stdev = stats[:R, 1].reshape(B, 1, C)
    kadj = stats[:R, 2].reshape(B, 1, C)
    return y, mean, stdev, kadj


def revin_sk_denorm(x, affine_weight, affine_bias,
                    kurtosis_adjustment, stdev, mean, eps=1e-5):
    """mode='denorm'. Inverse transform using stored statistics."""
    B, T, C = x.shape
    R = B * C

    x_rows = jnp.transpose(x, (0, 2, 1)).reshape(R, T)
    prm = jnp.stack([affine_weight, affine_bias], axis=-1)
    prm_rows = jnp.tile(prm.astype(jnp.float32), (B, 1))     # (R, 2)
    stats_rows = jnp.stack(
        [mean.reshape(R), stdev.reshape(R), kurtosis_adjustment.reshape(R)],
        axis=-1).astype(jnp.float32)                          # (R, 3)

    rb = _row_block(R, T)
    n_steps = pl.cdiv(R, rb)
    r_pad = n_steps * rb
    x_rows = _pad_rows(x_rows, r_pad, 0.0)
    prm_rows = _pad_rows(prm_rows, r_pad, 1.0)
    stats_rows = _pad_rows(stats_rows, r_pad, 1.0)

    kernel = functools.partial(_denorm_kernel, eps=eps)
    y_rows = pl.pallas_call(
        kernel,
        out_shape=jax.ShapeDtypeStruct((r_pad, T), x.dtype),
        grid_spec=pltpu.PrefetchScalarGridSpec(
            num_scalar_prefetch=0,
            grid=(n_steps,),
            in_specs=[pl.BlockSpec((rb, T), lambda i: (i, 0)),
                      pl.BlockSpec((rb, 2), lambda i: (i, 0)),
                      pl.BlockSpec((rb, 3), lambda i: (i, 0))],
            out_specs=pl.BlockSpec((rb, T), lambda i: (i, 0)),
        ),
        compiler_params=pltpu.CompilerParams(
            dimension_semantics=("parallel",),
            vmem_limit_bytes=_VMEM_LIMIT),
    )(x_rows, prm_rows, stats_rows)

    return jnp.transpose(y_rows[:R].reshape(B, C, T), (0, 2, 1))


# ----------------------------- pure-JAX reference --------------------------- #

def _ref_norm(x, w, b, kw, eps=1e-5):
    mean = jnp.mean(x, axis=1, keepdims=True)
    var = jnp.mean((x - mean) ** 2, axis=1, keepdims=True)
    stdev = jnp.sqrt(var + eps)
    z = (x - mean) / stdev
    kurt = jnp.mean(z ** 4, axis=1, keepdims=True) - 3.0
    kadj = (kw + eps) / (kurt + eps)
    y = z / kadj
    y = y * w + b
    return y, mean, stdev, kadj


def _ref_denorm(x, w, b, kadj, stdev, mean, eps=1e-5):
    x = x - b
    x = x / (w + eps * eps)
    x = x * kadj
    x = x * stdev
    x = x + mean
    return x


# --------------------------------- main ------------------------------------ #

if __name__ == "__main__":
    B, T, C = 2, 8, 4          # batch, seq_len, num_features
    eps = 1e-5

    key = jax.random.PRNGKey(0)
    x = jax.random.normal(key, (B, T, C), dtype=jnp.float32) * 2.0 + 0.5

    # Deterministic parameter init (matches nn.Parameter inits in __init__):
    affine_weight = jnp.ones((C,), dtype=jnp.float32)
    affine_bias = jnp.zeros((C,), dtype=jnp.float32)
    # skewness_weight exists in the module but is unused in forward.
    kurtosis_weight = jnp.ones((C,), dtype=jnp.float32)

    # mode == 'norm'
    y, mean, stdev, kadj = revin_sk_norm(
        x, affine_weight, affine_bias, kurtosis_weight, eps=eps)
    jax.block_until_ready(y)

    # mode == 'denorm' (uses statistics saved from the 'norm' pass)
    x_rec = revin_sk_denorm(
        y, affine_weight, affine_bias, kadj, stdev, mean, eps=eps)
    jax.block_until_ready(x_rec)

    # Verify against pure-JAX reference of the PyTorch semantics.
    y_ref, mean_ref, std_ref, kadj_ref = _ref_norm(
        x, affine_weight, affine_bias, kurtosis_weight, eps=eps)
    xr_ref = _ref_denorm(y_ref, affine_weight, affine_bias,
                         kadj_ref, std_ref, mean_ref, eps=eps)

    np.testing.assert_allclose(np.asarray(y), np.asarray(y_ref),
                               rtol=1e-5, atol=1e-5)
    np.testing.assert_allclose(np.asarray(mean), np.asarray(mean_ref),
                               rtol=1e-5, atol=1e-5)
    np.testing.assert_allclose(np.asarray(stdev), np.asarray(std_ref),
                               rtol=1e-5, atol=1e-5)
    np.testing.assert_allclose(np.asarray(kadj), np.asarray(kadj_ref),
                               rtol=1e-5, atol=1e-5)
    np.testing.assert_allclose(np.asarray(x_rec), np.asarray(xr_ref),
                               rtol=1e-5, atol=1e-5)

    print("KERNEL_OK")
</pallas_src>

<mosaic_0001>
module attributes {stable_mosaic.version = 11 : i64} {
  func.func @_norm_kernel(%arg0: i32, %arg1: memref<8x8xf32, #tpu.memory_space<vmem>>, %arg2: memref<8x3xf32, #tpu.memory_space<vmem>>, %arg3: memref<8x8xf32, #tpu.memory_space<vmem>>, %arg4: memref<8x3xf32, #tpu.memory_space<vmem>>) attributes {dimension_semantics = [#tpu.dimension_semantics<parallel>], iteration_bounds = array<i64: 1>, scalar_prefetch = 0 : i64, scratch_operands = 0 : i64, tpu.core_type = #tpu.core_type<tc>, window_params = [{transform_indices = @transform_0, window_bounds = array<i64: 8, 8>}, {transform_indices = @transform_1, window_bounds = array<i64: 8, 3>}, {transform_indices = @transform_2, window_bounds = array<i64: 8, 8>}, {transform_indices = @transform_3, window_bounds = array<i64: 8, 3>}]} {
    %c0 = arith.constant 0 : index
    %c0_0 = arith.constant 0 : index
    %0 = vector.load %arg1[%c0, %c0_0] : memref<8x8xf32, #tpu.memory_space<vmem>>, vector<8x8xf32>
    %c0_1 = arith.constant 0 : index
    %c0_2 = arith.constant 0 : index
    %1 = vector.load %arg2[%c0_1, %c0_2] : memref<8x3xf32, #tpu.memory_space<vmem>>, vector<8x1xf32>
    %c0_3 = arith.constant 0 : index
    %c1 = arith.constant 1 : index
    %2 = vector.load %arg2[%c0_3, %c1] : memref<8x3xf32, #tpu.memory_space<vmem>>, vector<8x1xf32>
    %c0_4 = arith.constant 0 : index
    %c2 = arith.constant 2 : index
    %3 = vector.load %arg2[%c0_4, %c2] : memref<8x3xf32, #tpu.memory_space<vmem>>, vector<8x1xf32>
    %cst = arith.constant dense<0.000000e+00> : vector<8xf32>
    %4 = vector.multi_reduction <add>, %0, %cst [1] : vector<8x8xf32> to vector<8xf32>
    %5 = vector.shape_cast %4 : vector<8xf32> to vector<8x1xf32>
    %cst_5 = arith.constant 8.000000e+00 : f32
    %6 = vector.broadcast %cst_5 : f32 to vector<8x1xf32>
    %7 = arith.divf %5, %6 : vector<8x1xf32>
    %8 = vector.broadcast %7 : vector<8x1xf32> to vector<8x8xf32>
    %9 = arith.subf %0, %8 : vector<8x8xf32>
    %10 = arith.mulf %9, %9 : vector<8x8xf32>
    %cst_6 = arith.constant dense<0.000000e+00> : vector<8xf32>
    %11 = vector.multi_reduction <add>, %10, %cst_6 [1] : vector<8x8xf32> to vector<8xf32>
    %12 = vector.shape_cast %11 : vector<8xf32> to vector<8x1xf32>
    %cst_7 = arith.constant 8.000000e+00 : f32
    %13 = vector.broadcast %cst_7 : f32 to vector<8x1xf32>
    %14 = arith.divf %12, %13 : vector<8x1xf32>
    %15 = arith.mulf %10, %10 : vector<8x8xf32>
    %cst_8 = arith.constant dense<0.000000e+00> : vector<8xf32>
    %16 = vector.multi_reduction <add>, %15, %cst_8 [1] : vector<8x8xf32> to vector<8xf32>
    %17 = vector.shape_cast %16 : vector<8xf32> to vector<8x1xf32>
    %cst_9 = arith.constant 8.000000e+00 : f32
    %18 = vector.broadcast %cst_9 : f32 to vector<8x1xf32>
    %19 = arith.divf %17, %18 : vector<8x1xf32>
    %cst_10 = arith.constant 9.99999974E-6 : f32
    %20 = vector.broadcast %cst_10 : f32 to vector<8x1xf32>
    %21 = arith.addf %14, %20 : vector<8x1xf32>
    %22 = math.sqrt %21 : vector<8x1xf32>
    %cst_11 = arith.constant 1.000000e+00 : f32
    %23 = vector.broadcast %cst_11 : f32 to vector<8x1xf32>
    %24 = arith.divf %23, %22 : vector<8x1xf32>
    %25 = arith.mulf %24, %24 : vector<8x1xf32>
    %26 = arith.mulf %25, %25 : vector<8x1xf32>
    %27 = arith.mulf %19, %26 : vector<8x1xf32>
    %cst_12 = arith.constant 3.000000e+00 : f32
    %28 = vector.broadcast %cst_12 : f32 to vector<8x1xf32>
    %29 = arith.subf %27, %28 : vector<8x1xf32>
    %cst_13 = arith.constant 9.99999974E-6 : f32
    %30 = vector.broadcast %cst_13 : f32 to vector<8x1xf32>
    %31 = arith.addf %3, %30 : vector<8x1xf32>
    %cst_14 = arith.constant 9.99999974E-6 : f32
    %32 = vector.broadcast %cst_14 : f32 to vector<8x1xf32>
    %33 = arith.addf %29, %32 : vector<8x1xf32>
    %34 = arith.divf %31, %33 : vector<8x1xf32>
    %35 = arith.mulf %1, %24 : vector<8x1xf32>
    %36 = arith.divf %35, %34 : vector<8x1xf32>
    %37 = vector.broadcast %36 : vector<8x1xf32> to vector<8x8xf32>
    %38 = arith.mulf %9, %37 : vector<8x8xf32>
    %39 = vector.broadcast %2 : vector<8x1xf32> to vector<8x8xf32>
    %40 = arith.addf %38, %39 : vector<8x8xf32>
    %c0_15 = arith.constant 0 : index
    %c0_16 = arith.constant 0 : index
    %41 = vector.load %arg3[%c0_15, %c0_16] : memref<8x8xf32, #tpu.memory_space<vmem>>, vector<8x8xf32>
    tpu.vector_store %arg3[%c0_15, %c0_16], %40 {strides = array<i32>} : memref<8x8xf32, #tpu.memory_space<vmem>>, vector<8x8xf32>,
    %c0_17 = arith.constant 0 : index
    %c0_18 = arith.constant 0 : index
    %42 = vector.load %arg4[%c0_17, %c0_18] : memref<8x3xf32, #tpu.memory_space<vmem>>, vector<8x1xf32>
    tpu.vector_store %arg4[%c0_17, %c0_18], %7 {strides = array<i32>} : memref<8x3xf32, #tpu.memory_space<vmem>>, vector<8x1xf32>,
    %c0_19 = arith.constant 0 : index
    %c1_20 = arith.constant 1 : index
    %43 = vector.load %arg4[%c0_19, %c1_20] : memref<8x3xf32, #tpu.memory_space<vmem>>, vector<8x1xf32>
    tpu.vector_store %arg4[%c0_19, %c1_20], %22 {strides = array<i32>} : memref<8x3xf32, #tpu.memory_space<vmem>>, vector<8x1xf32>,
    %c0_21 = arith.constant 0 : index
    %c2_22 = arith.constant 2 : index
    %44 = vector.load %arg4[%c0_21, %c2_22] : memref<8x3xf32, #tpu.memory_space<vmem>>, vector<8x1xf32>
    tpu.vector_store %arg4[%c0_21, %c2_22], %34 {strides = array<i32>} : memref<8x3xf32, #tpu.memory_space<vmem>>, vector<8x1xf32>,
    return
  }
  func.func @transform_0(%arg0: i32) -> (i32, i32) {
    %c0_i32 = arith.constant 0 : i32
    %c0_i32_0 = arith.constant 0 : i32
    return %arg0, %c0_i32 : i32, i32
  }
  func.func @transform_1(%arg0: i32) -> (i32, i32) {
    %c0_i32 = arith.constant 0 : i32
    %c0_i32_0 = arith.constant 0 : i32
    return %arg0, %c0_i32 : i32, i32
  }
  func.func @transform_2(%arg0: i32) -> (i32, i32) {
    %c0_i32 = arith.constant 0 : i32
    %c0_i32_0 = arith.constant 0 : i32
    return %arg0, %c0_i32 : i32, i32
  }
  func.func @transform_3(%arg0: i32) -> (i32, i32) {
    %c0_i32 = arith.constant 0 : i32
    %c0_i32_0 = arith.constant 0 : i32
    return %arg0, %c0_i32 : i32, i32
  }
}

</mosaic_0001>

<llo_original>
// kernel: tpu_custom_call.1
$region0: #{tpu_custom_call.1}
  #allocation0 [shape = 'u32[]', space=smem, size = 0x4, offset = 0x4, fixed_abs, tag = 'smem constant byte address 0x4 - core index']
  #allocation1 [shape = 'u32[144,128]{1,0:T(1,128)}', space=vmem, size = 0x12000, scoped, tag = 'internal scratch']
  %s0 = inlined_call_operand.vmem [shape: f32[8,8], index: 0, kind: input, shape index: {}]
  %s1 = inlined_call_operand.vmem [shape: f32[8,3], index: 1, kind: input, shape index: {}]
  %s2 = inlined_call_operand.hbm [shape: f32[8,8], index: 2, kind: output, shape index: {0}]
  %s3 = inlined_call_operand.vmem [shape: f32[8,3], index: 3, kind: output, shape index: {1}]
  %4 = xla_tuple %s2, %s3
  %s5 = sld [smem:[#allocation0]]
  $region26: #{tpu_custom_call.1} parent=0
    _
  %s7 = ssub.s32 1, %s5
  %s8 = scalar_select 0, %s7, %s5
  $region1: #{tpu_custom_call.1} parent=0
    #allocation2 [shape = 'u8[4096]{0}', space=vmem, size = 0x1000, scoped, tag = 'output window, operand 0, single buffered']
    #allocation3 [shape = 's32[1]{0}', space=sflag, size = 0x4, scoped, tag = 'scoped memory for tpu_custom_call.1']
    %9 = vsyncpa [#allocation3], 0
    // Predicated region
    $region2: #{tpu_custom_call.1} parent=1 // pred_check
      _
    $region3: #{tpu_custom_call.1} parent=1 // pred_check_branch
      %11 = sbr.rel (0) target = $region5
    $region4: #{tpu_custom_call.1} parent=1 // pred_region
      _
    $region5: #{tpu_custom_call.1} parent=1 // pred_fallthru
      _
    // Predicated region
    $region6: #{tpu_custom_call.1} parent=1 // pred_check
      _
    $region7: #{tpu_custom_call.1} parent=1 // pred_check_branch
      %13 = sbr.rel (0) target = $region9
    $region8: #{tpu_custom_call.1} parent=1 // pred_region
      _
    $region9: #{tpu_custom_call.1} parent=1 // pred_fallthru
      _
    %v14 = vld [vmem:[%s0] sm:$0xff]
    %v15 = vld [vmem:[%s1] sm:$0xff]
    %vm16 = vcmask 64512
    %v17 = vsel %vm16, %v14, 0.0
    %18 = vadd.xlane.f32.xlu0 %v17
    %v19 = vpop.xlane.xlu0 %18
    %v20 = vrcp.pop 8.0
    %v21 = vmul.f32 %v19, %v20
    %v22 = vsub.f32 %v14, %v21
    %v23 = vmul.f32 %v22, %v22
    %v24 = vsel %vm16, %v23, 0.0
    %25 = vadd.xlane.f32.xlu0 %v24
    %v26 = vpop.xlane.xlu0 %25
    %v27 = vmul.f32 %v26, %v20
    %v28 = vmul.f32 %v23, %v23
    %v29 = vsel %vm16, %v28, 0.0
    %30 = vadd.xlane.f32.xlu0 %v29
    %v31 = vpop.xlane.xlu0 %30
    %v32 = vmul.f32 %v31, %v20
    %v33 = vadd.f32 %v27, 1e-05
    %v34 = vrsqrt.pop %v33
    %v35 = vmul.f32 %v33, %v34
    %vm36 = vcmp.eq.f32.partialorder %v33, inf
    %v37 = vsel %vm36, %v33, %v35
    %vm38 = vcmp.eq.f32.partialorder %v33, 0.0
    %v39 = vand.u32 %v33, 2147483648
    %v40 = vsel %vm38, %v39, %v37
    %v41 = vrcp.pop %v40
    %v42 = vmul.f32 1.0, %v41
    %v43 = vmul.f32 %v42, %v42
    %v44 = vmul.f32 %v43, %v43
    %v45 = vmul.f32 %v32, %v44
    %v46 = vsub.f32 %v45, 3.0
    %v47 = vadd.f32 %v15, 1e-05
    %v48 = vadd.f32 %v46, 1e-05
    %v49 = vrcp.pop %v48
    %v50 = vmul.f32 %v47, %v49
    %v51 = vmul.f32 %v15, %v42
    %53 = vrot.lane.b32.xlu0 %v50, 126
    %v54 = vpop.permute.xlu0 %53
    %v56 = vrcp.pop %v54
    %v57 = vmul.f32 %v51, %v56
    %59 = vset.pattern.permute.xlu0 0
    %60 = vperm.xlu0 %59, %v57
    %v61 = vpop.permute.xlu0 %60
    %v63 = vmul.f32 %v22, %v61
    %65 = vset.pattern.permute.xlu0 1
    %66 = vperm.xlu0 %65, %v15
    %v67 = vpop.permute.xlu0 %66
    %v69 = vadd.f32 %v63, %v67
    %70 = vst.msk [vmem:[#allocation2] sm:$0xff] %vm16, %v69
    %vm71 = vcmask 7168
    %72 = vst.msk [vmem:[%s3] sm:$0xff] %vm71, %v21
    %vm73 = vcmask 15368
    %74 = vst.msk [vmem:[%s3] sm:$0xff] %vm73, %v40
    %vm75 = vcmask 23568
    %76 = vst.msk [vmem:[%s3] sm:$0xff] %vm75, %v50
    // Predicated region
    $region10: #{tpu_custom_call.1} parent=1 // pred_check
      _
    $region11: #{tpu_custom_call.1} parent=1 // pred_check_branch
      %78 = sbr.rel (0) target = $region13
    $region12: #{tpu_custom_call.1} parent=1 // pred_region
      %s80 = ssub.s32 128, 128
      %81 = vsyncadd [#allocation3], %s80
      %s83 = sshll.u32 [#allocation2], 4
      %s84 = int_to_ptr.vmem [resolvable:$true] %s83
      %86 = dma.vmem_to_hbm [thread:$0]  %s84, 128, %s2, [#allocation3]
    $region13: #{tpu_custom_call.1} parent=1 // pred_fallthru
      _
    // Predicated region
    $region14: #{tpu_custom_call.1} parent=1 // pred_check
      _
    $region15: #{tpu_custom_call.1} parent=1 // pred_check_branch
      %88 = sbr.rel (0) target = $region17
    $region16: #{tpu_custom_call.1} parent=1 // pred_region
      _
    $region17: #{tpu_custom_call.1} parent=1 // pred_fallthru
      _
    // Predicated region
    $region18: #{tpu_custom_call.1} parent=1 // pred_check
      _
    $region19: #{tpu_custom_call.1} parent=1 // pred_check_branch
      %90 = sbr.rel (0) target = $region21
    $region20: #{tpu_custom_call.1} parent=1 // pred_region
      %91 = dma.done [#allocation3], 128
    $region21: #{tpu_custom_call.1} parent=1 // pred_fallthru
      _
    // Predicated region
    $region22: #{tpu_custom_call.1} parent=1 // pred_check
      _
    $region23: #{tpu_custom_call.1} parent=1 // pred_check_branch
      %93 = sbr.rel (0) target = $region25
    $region24: #{tpu_custom_call.1} parent=1 // pred_region
      _
    $region25: #{tpu_custom_call.1} parent=1 // pred_fallthru
      _
    %94 = vsyncpa [#allocation3], 1

</llo_original>
